<compile_context>
chip_gen: v6e
topology: v6e:2x2x1
jax: 0.10.0
libtpu: 0.0.40
codegen_flags: <defaults>
</compile_context>

<pallas_src>
import jax
import jax.numpy as jnp
from jax.experimental import pallas as pl
from jax.experimental.pallas import tpu as pltpu

DROPOUT1 = 0.2
DROPOUT2 = 0.5
LANE = 128
SUBLANE = 8
TB_MAX = 512  # batch-tile rows; sized for v7x's smaller VMEM as well


def _round_up(x, m):
    return ((x + m - 1) // m) * m


def _dropout(h, u, p):
    """Matches torch dropout_layer: mask = (rand > p).float(); mask*h/(1-p).
    p is a trace-time constant, so the p==0 / p==1 edge cases are static."""
    if p == 0.0:
        return h
    if p == 1.0:
        return jnp.zeros_like(h)
    scale = jnp.float32(1.0 / (1.0 - p))
    return jnp.where(u > jnp.float32(p), h * scale, jnp.float32(0.0))


def mlp_dropout_kernel(x_ref, u1_ref, u2_ref,
                       w1_ref, b1_ref, w2_ref, b2_ref, w3_ref, b3_ref,
                       out_ref):
    # bf16 operands for the MXU, f32 accumulation and elementwise math.
    x = x_ref[...].astype(jnp.bfloat16)

    h1 = jnp.dot(x, w1_ref[...], preferred_element_type=jnp.float32) + b1_ref[...]
    h1 = jnp.maximum(h1, 0.0)
    h1 = _dropout(h1, u1_ref[...], DROPOUT1)

    h2 = jnp.dot(h1.astype(jnp.bfloat16), w2_ref[...],
                 preferred_element_type=jnp.float32) + b2_ref[...]
    h2 = jnp.maximum(h2, 0.0)
    h2 = _dropout(h2, u2_ref[...], DROPOUT2)

    out = jnp.dot(h2.astype(jnp.bfloat16), w3_ref[...],
                  preferred_element_type=jnp.float32) + b3_ref[...]
    out_ref[...] = out.astype(out_ref.dtype)


def mlp_eval_kernel(x_ref,
                    w1_ref, b1_ref, w2_ref, b2_ref, w3_ref, b3_ref,
                    out_ref):
    # is_training=False path (no dropout).
    x = x_ref[...].astype(jnp.bfloat16)
    h1 = jnp.maximum(
        jnp.dot(x, w1_ref[...], preferred_element_type=jnp.float32) + b1_ref[...],
        0.0)
    h2 = jnp.maximum(
        jnp.dot(h1.astype(jnp.bfloat16), w2_ref[...],
                preferred_element_type=jnp.float32) + b2_ref[...],
        0.0)
    out = jnp.dot(h2.astype(jnp.bfloat16), w3_ref[...],
                  preferred_element_type=jnp.float32) + b3_ref[...]
    out_ref[...] = out.astype(out_ref.dtype)


def init_params(key, num_inputs, num_outputs, num_hiddens1, num_hiddens2):
    """PyTorch nn.Linear-style init: U(-1/sqrt(fan_in), 1/sqrt(fan_in)).
    Weights stored as (in, out) (transpose of torch's (out, in)); bias (1, out)."""
    ks = jax.random.split(key, 6)

    def lin(kw, kb, fan_in, fan_out):
        bound = 1.0 / float(fan_in) ** 0.5
        w = jax.random.uniform(kw, (fan_in, fan_out), jnp.float32, -bound, bound)
        b = jax.random.uniform(kb, (1, fan_out), jnp.float32, -bound, bound)
        return w, b

    w1, b1 = lin(ks[0], ks[1], num_inputs, num_hiddens1)
    w2, b2 = lin(ks[2], ks[3], num_hiddens1, num_hiddens2)
    w3, b3 = lin(ks[4], ks[5], num_hiddens2, num_outputs)
    return (w1, b1, w2, b2, w3, b3)


def net_forward(x, params, *, key=None, is_training=True):
    w1, b1, w2, b2, w3, b3 = params
    num_inputs = w1.shape[0]
    nh1 = w1.shape[1]
    nh2 = w2.shape[1]
    num_outputs = w3.shape[1]

    # X.reshape((-1, num_inputs))
    x2 = x.reshape(-1, num_inputs).astype(jnp.float32)
    batch = x2.shape[0]

    # Batch tiling: stream TB-row tiles of X / dropout uniforms / out.
    tb = min(TB_MAX, _round_up(batch, SUBLANE))
    pb = _round_up(batch, tb)
    if pb != batch:
        x2 = jnp.pad(x2, ((0, pb - batch), (0, 0)))
    grid = (pb // tb,)

    # Lane-dense output slab: pad the output feature dim to a multiple of 128.
    out_pad = _round_up(max(num_outputs, LANE), LANE)

    # Weight prep: bf16 (in, out) matmul operands, f32 (1, out) biases.
    w1b = w1.astype(jnp.bfloat16)
    w2b = w2.astype(jnp.bfloat16)
    w3b = jnp.zeros((nh2, out_pad), jnp.bfloat16).at[:, :num_outputs].set(
        w3.astype(jnp.bfloat16))
    b1f = b1.reshape(1, nh1).astype(jnp.float32)
    b2f = b2.reshape(1, nh2).astype(jnp.float32)
    b3f = jnp.zeros((1, out_pad), jnp.float32).at[:, :num_outputs].set(
        b3.reshape(1, num_outputs).astype(jnp.float32))

    def row_spec(feat):           # streamed per-tile arrays
        return pl.BlockSpec((tb, feat), lambda i: (i, 0))

    def res_spec(shape):          # VMEM-resident across the whole grid
        return pl.BlockSpec(shape, lambda i: (0, 0))

    out_shape = jax.ShapeDtypeStruct((pb, out_pad), jnp.float32)

    flops = 2 * pb * (num_inputs * nh1 + nh1 * nh2 + nh2 * out_pad)
    bytes_accessed = (4 * pb * (num_inputs + nh1 + nh2 + out_pad)
                      + 2 * (num_inputs * nh1 + nh1 * nh2 + nh2 * out_pad))
    cost = pl.CostEstimate(flops=flops, transcendentals=0,
                           bytes_accessed=bytes_accessed)
    cparams = pltpu.CompilerParams(dimension_semantics=("parallel",))

    if is_training:
        if key is None:
            key = jax.random.PRNGKey(0)
        k1, k2 = jax.random.split(key)
        # Same keep-probability semantics as torch: mask = (uniform > p).
        u1 = jax.random.uniform(k1, (pb, nh1), jnp.float32)
        u2 = jax.random.uniform(k2, (pb, nh2), jnp.float32)
        out = pl.pallas_call(
            mlp_dropout_kernel,
            out_shape=out_shape,
            grid=grid,
            in_specs=[row_spec(num_inputs), row_spec(nh1), row_spec(nh2),
                      res_spec((num_inputs, nh1)), res_spec((1, nh1)),
                      res_spec((nh1, nh2)), res_spec((1, nh2)),
                      res_spec((nh2, out_pad)), res_spec((1, out_pad))],
            out_specs=row_spec(out_pad),
            compiler_params=cparams,
            cost_estimate=cost,
        )(x2, u1, u2, w1b, b1f, w2b, b2f, w3b, b3f)
    else:
        out = pl.pallas_call(
            mlp_eval_kernel,
            out_shape=out_shape,
            grid=grid,
            in_specs=[row_spec(num_inputs),
                      res_spec((num_inputs, nh1)), res_spec((1, nh1)),
                      res_spec((nh1, nh2)), res_spec((1, nh2)),
                      res_spec((nh2, out_pad)), res_spec((1, out_pad))],
            out_specs=row_spec(out_pad),
            compiler_params=cparams,
            cost_estimate=cost,
        )(x2, w1b, b1f, w2b, b2f, w3b, b3f)

    # Un-pad: real batch rows, real output columns.
    return out[:batch, :num_outputs]


if __name__ == "__main__":
    num_inputs, num_hiddens1, num_hiddens2, num_outputs = 64, 128, 64, 32

    key = jax.random.PRNGKey(0)
    kx, kp, kd = jax.random.split(key, 3)

    # (2, 4, 64) -> reshaped by the forward to (8, 64) rows.
    x = jax.random.normal(kx, (2, 4, 64), dtype=jnp.float32)
    params = init_params(kp, num_inputs, num_outputs, num_hiddens1, num_hiddens2)

    out = net_forward(x, params, key=kd, is_training=True)
    out = jax.block_until_ready(out)
    assert out.shape == (8, num_outputs), out.shape
    assert bool(jnp.all(jnp.isfinite(out)))

    out_eval = jax.block_until_ready(net_forward(x, params, is_training=False))
    assert out_eval.shape == (8, num_outputs), out_eval.shape
    assert bool(jnp.all(jnp.isfinite(out_eval)))

    print("KERNEL_OK")
</pallas_src>

<mosaic_0001>
module attributes {stable_mosaic.version = 11 : i64} {
  func.func @mlp_dropout_kernel(%arg0: i32, %arg1: memref<8x64xf32, #tpu.memory_space<vmem>>, %arg2: memref<8x128xf32, #tpu.memory_space<vmem>>, %arg3: memref<8x64xf32, #tpu.memory_space<vmem>>, %arg4: memref<64x128xbf16, #tpu.memory_space<vmem>>, %arg5: memref<1x128xf32, #tpu.memory_space<vmem>>, %arg6: memref<128x64xbf16, #tpu.memory_space<vmem>>, %arg7: memref<1x64xf32, #tpu.memory_space<vmem>>, %arg8: memref<64x128xbf16, #tpu.memory_space<vmem>>, %arg9: memref<1x128xf32, #tpu.memory_space<vmem>>, %arg10: memref<8x128xf32, #tpu.memory_space<vmem>>) attributes {dimension_semantics = [#tpu.dimension_semantics<parallel>], iteration_bounds = array<i64: 1>, scalar_prefetch = 0 : i64, scratch_operands = 0 : i64, tpu.core_type = #tpu.core_type<tc>, window_params = [{transform_indices = @transform_0, window_bounds = array<i64: 8, 64>}, {transform_indices = @transform_1, window_bounds = array<i64: 8, 128>}, {transform_indices = @transform_2, window_bounds = array<i64: 8, 64>}, {pipeline_mode = #tpu.pipeline_mode<synchronous>, transform_indices = @transform_3, window_bounds = array<i64: 64, 128>}, {pipeline_mode = #tpu.pipeline_mode<synchronous>, transform_indices = @transform_4, window_bounds = array<i64: 1, 128>}, {pipeline_mode = #tpu.pipeline_mode<synchronous>, transform_indices = @transform_5, window_bounds = array<i64: 128, 64>}, {pipeline_mode = #tpu.pipeline_mode<synchronous>, transform_indices = @transform_6, window_bounds = array<i64: 1, 64>}, {pipeline_mode = #tpu.pipeline_mode<synchronous>, transform_indices = @transform_7, window_bounds = array<i64: 64, 128>}, {pipeline_mode = #tpu.pipeline_mode<synchronous>, transform_indices = @transform_8, window_bounds = array<i64: 1, 128>}, {transform_indices = @transform_9, window_bounds = array<i64: 8, 128>}]} {
    %c0 = arith.constant 0 : index
    %c0_0 = arith.constant 0 : index
    %0 = vector.load %arg1[%c0, %c0_0] : memref<8x64xf32, #tpu.memory_space<vmem>>, vector<8x64xf32>
    %1 = arith.truncf %0 : vector<8x64xf32> to vector<8x64xbf16>
    %c0_1 = arith.constant 0 : index
    %c0_2 = arith.constant 0 : index
    %2 = vector.load %arg4[%c0_1, %c0_2] : memref<64x128xbf16, #tpu.memory_space<vmem>>, vector<64x128xbf16>
    %cst = arith.constant dense<0.000000e+00> : vector<8x128xf32>
    %3 = tpu.matmul %1, %2, %cst {dimension_numbers = #tpu.dot_dimension_numbers<[1], [0], [0], [1], [0, 0, 1, 1], [], []>} : vector<8x64xbf16>, vector<64x128xbf16>, vector<8x128xf32> -> vector<8x128xf32>
    %c0_3 = arith.constant 0 : index
    %c0_4 = arith.constant 0 : index
    %4 = vector.load %arg5[%c0_3, %c0_4] : memref<1x128xf32, #tpu.memory_space<vmem>>, vector<1x128xf32>
    %5 = vector.broadcast %4 : vector<1x128xf32> to vector<8x128xf32>
    %6 = arith.addf %3, %5 : vector<8x128xf32>
    %cst_5 = arith.constant 0.000000e+00 : f32
    %7 = vector.broadcast %cst_5 : f32 to vector<8x128xf32>
    %8 = arith.maximumf %6, %7 : vector<8x128xf32>
    %c0_6 = arith.constant 0 : index
    %c0_7 = arith.constant 0 : index
    %9 = vector.load %arg2[%c0_6, %c0_7] : memref<8x128xf32, #tpu.memory_space<vmem>>, vector<8x128xf32>
    %cst_8 = arith.constant 2.000000e-01 : f32
    %10 = vector.broadcast %cst_8 : f32 to vector<8x128xf32>
    %11 = arith.cmpf ogt, %9, %10 : vector<8x128xf32>
    %cst_9 = arith.constant 1.250000e+00 : f32
    %12 = vector.broadcast %cst_9 : f32 to vector<8x128xf32>
    %13 = arith.mulf %8, %12 : vector<8x128xf32>
    %cst_10 = arith.constant 0.000000e+00 : f32
    %14 = vector.broadcast %cst_10 : f32 to vector<8x128xf32>
    %15 = arith.select %11, %13, %14 : vector<8x128xi1>, vector<8x128xf32>
    %16 = arith.truncf %15 : vector<8x128xf32> to vector<8x128xbf16>
    %c0_11 = arith.constant 0 : index
    %c0_12 = arith.constant 0 : index
    %17 = vector.load %arg6[%c0_11, %c0_12] : memref<128x64xbf16, #tpu.memory_space<vmem>>, vector<128x64xbf16>
    %cst_13 = arith.constant dense<0.000000e+00> : vector<8x64xf32>
    %18 = tpu.matmul %16, %17, %cst_13 {dimension_numbers = #tpu.dot_dimension_numbers<[1], [0], [0], [1], [0, 0, 1, 1], [], []>} : vector<8x128xbf16>, vector<128x64xbf16>, vector<8x64xf32> -> vector<8x64xf32>
    %c0_14 = arith.constant 0 : index
    %c0_15 = arith.constant 0 : index
    %19 = vector.load %arg7[%c0_14, %c0_15] : memref<1x64xf32, #tpu.memory_space<vmem>>, vector<1x64xf32>
    %20 = vector.broadcast %19 : vector<1x64xf32> to vector<8x64xf32>
    %21 = arith.addf %18, %20 : vector<8x64xf32>
    %cst_16 = arith.constant 0.000000e+00 : f32
    %22 = vector.broadcast %cst_16 : f32 to vector<8x64xf32>
    %23 = arith.maximumf %21, %22 : vector<8x64xf32>
    %c0_17 = arith.constant 0 : index
    %c0_18 = arith.constant 0 : index
    %24 = vector.load %arg3[%c0_17, %c0_18] : memref<8x64xf32, #tpu.memory_space<vmem>>, vector<8x64xf32>
    %cst_19 = arith.constant 5.000000e-01 : f32
    %25 = vector.broadcast %cst_19 : f32 to vector<8x64xf32>
    %26 = arith.cmpf ogt, %24, %25 : vector<8x64xf32>
    %cst_20 = arith.constant 2.000000e+00 : f32
    %27 = vector.broadcast %cst_20 : f32 to vector<8x64xf32>
    %28 = arith.mulf %23, %27 : vector<8x64xf32>
    %cst_21 = arith.constant 0.000000e+00 : f32
    %29 = vector.broadcast %cst_21 : f32 to vector<8x64xf32>
    %30 = arith.select %26, %28, %29 : vector<8x64xi1>, vector<8x64xf32>
    %31 = arith.truncf %30 : vector<8x64xf32> to vector<8x64xbf16>
    %c0_22 = arith.constant 0 : index
    %c0_23 = arith.constant 0 : index
    %32 = vector.load %arg8[%c0_22, %c0_23] : memref<64x128xbf16, #tpu.memory_space<vmem>>, vector<64x128xbf16>
    %cst_24 = arith.constant dense<0.000000e+00> : vector<8x128xf32>
    %33 = tpu.matmul %31, %32, %cst_24 {dimension_numbers = #tpu.dot_dimension_numbers<[1], [0], [0], [1], [0, 0, 1, 1], [], []>} : vector<8x64xbf16>, vector<64x128xbf16>, vector<8x128xf32> -> vector<8x128xf32>
    %c0_25 = arith.constant 0 : index
    %c0_26 = arith.constant 0 : index
    %34 = vector.load %arg9[%c0_25, %c0_26] : memref<1x128xf32, #tpu.memory_space<vmem>>, vector<1x128xf32>
    %35 = vector.broadcast %34 : vector<1x128xf32> to vector<8x128xf32>
    %36 = arith.addf %33, %35 : vector<8x128xf32>
    %c0_27 = arith.constant 0 : index
    %c0_28 = arith.constant 0 : index
    %37 = vector.load %arg10[%c0_27, %c0_28] : memref<8x128xf32, #tpu.memory_space<vmem>>, vector<8x128xf32>
    tpu.vector_store %arg10[%c0_27, %c0_28], %36 {strides = array<i32>} : memref<8x128xf32, #tpu.memory_space<vmem>>, vector<8x128xf32>,
    return
  }
  func.func @transform_0(%arg0: i32) -> (i32, i32) {
    %c0_i32 = arith.constant 0 : i32
    %c0_i32_0 = arith.constant 0 : i32
    return %arg0, %c0_i32 : i32, i32
  }
  func.func @transform_1(%arg0: i32) -> (i32, i32) {
    %c0_i32 = arith.constant 0 : i32
    %c0_i32_0 = arith.constant 0 : i32
    return %arg0, %c0_i32 : i32, i32
  }
  func.func @transform_2(%arg0: i32) -> (i32, i32) {
    %c0_i32 = arith.constant 0 : i32
    %c0_i32_0 = arith.constant 0 : i32
    return %arg0, %c0_i32 : i32, i32
  }
  func.func @transform_3(%arg0: i32) -> (i32, i32) {
    %c0_i32 = arith.constant 0 : i32
    %c0_i32_0 = arith.constant 0 : i32
    %c0_i32_1 = arith.constant 0 : i32
    return %c0_i32, %c0_i32_0 : i32, i32
  }
  func.func @transform_4(%arg0: i32) -> (i32, i32) {
    %c0_i32 = arith.constant 0 : i32
    %c0_i32_0 = arith.constant 0 : i32
    %c0_i32_1 = arith.constant 0 : i32
    return %c0_i32, %c0_i32_0 : i32, i32
  }
  func.func @transform_5(%arg0: i32) -> (i32, i32) {
    %c0_i32 = arith.constant 0 : i32
    %c0_i32_0 = arith.constant 0 : i32
    %c0_i32_1 = arith.constant 0 : i32
    return %c0_i32, %c0_i32_0 : i32, i32
  }
  func.func @transform_6(%arg0: i32) -> (i32, i32) {
    %c0_i32 = arith.constant 0 : i32
    %c0_i32_0 = arith.constant 0 : i32
    %c0_i32_1 = arith.constant 0 : i32
    return %c0_i32, %c0_i32_0 : i32, i32
  }
  func.func @transform_7(%arg0: i32) -> (i32, i32) {
    %c0_i32 = arith.constant 0 : i32
    %c0_i32_0 = arith.constant 0 : i32
    %c0_i32_1 = arith.constant 0 : i32
    return %c0_i32, %c0_i32_0 : i32, i32
  }
  func.func @transform_8(%arg0: i32) -> (i32, i32) {
    %c0_i32 = arith.constant 0 : i32
    %c0_i32_0 = arith.constant 0 : i32
    %c0_i32_1 = arith.constant 0 : i32
    return %c0_i32, %c0_i32_0 : i32, i32
  }
  func.func @transform_9(%arg0: i32) -> (i32, i32) {
    %c0_i32 = arith.constant 0 : i32
    %c0_i32_0 = arith.constant 0 : i32
    return %arg0, %c0_i32 : i32, i32
  }
}

</mosaic_0001>

<llo_original>
// kernel: tpu_custom_call.1
$region0: #{tpu_custom_call.1}
  #allocation0 [shape = 'u32[]', space=smem, size = 0x4, offset = 0x4, fixed_abs, tag = 'smem constant byte address 0x4 - core index']
  #allocation1 [shape = 'u32[144,128]{1,0:T(1,128)}', space=vmem, size = 0x12000, scoped, tag = 'internal scratch']
  %s0 = inlined_call_operand.vmem [shape: f32[8,64], index: 0, kind: input, shape index: {}]
  %s1 = inlined_call_operand.vmem [shape: f32[8,128], index: 1, kind: input, shape index: {}]
  %s2 = inlined_call_operand.vmem [shape: f32[8,64], index: 2, kind: input, shape index: {}]
  %s3 = inlined_call_operand.vmem [shape: bf16[64,128], index: 3, kind: input, shape index: {}]
  %s4 = inlined_call_operand.vmem [shape: f32[1,128], index: 4, kind: input, shape index: {}]
  %s5 = inlined_call_operand.vmem [shape: bf16[128,64], index: 5, kind: input, shape index: {}]
  %s6 = inlined_call_operand.vmem [shape: f32[1,64], index: 6, kind: input, shape index: {}]
  %s7 = inlined_call_operand.vmem [shape: bf16[64,128], index: 7, kind: input, shape index: {}]
  %s8 = inlined_call_operand.vmem [shape: f32[1,128], index: 8, kind: input, shape index: {}]
  %s9 = inlined_call_operand.hbm [shape: f32[8,128], index: 9, kind: output, shape index: {}]
  %s10 = sld [smem:[#allocation0]]
  $region46: #{tpu_custom_call.1} parent=0
    _
  %s12 = ssub.s32 1, %s10
  %s13 = scalar_select 0, %s12, %s10
  $region1: #{tpu_custom_call.1} parent=0
    #allocation2 [shape = 'u8[4096]{0}', space=vmem, size = 0x1000, scoped, tag = 'output window, operand 0, single buffered']
    #allocation3 [shape = 's32[1]{0}', space=sflag, size = 0x4, scoped, tag = 'scoped memory for tpu_custom_call.1']
    %14 = vsyncpa [#allocation3], 0
    // Predicated region
    $region2: #{tpu_custom_call.1} parent=1 // pred_check
      _
    $region3: #{tpu_custom_call.1} parent=1 // pred_check_branch
      %16 = sbr.rel (0) target = $region5
    $region4: #{tpu_custom_call.1} parent=1 // pred_region
      _
    $region5: #{tpu_custom_call.1} parent=1 // pred_fallthru
      _
    // Predicated region
    $region6: #{tpu_custom_call.1} parent=1 // pred_check
      _
    $region7: #{tpu_custom_call.1} parent=1 // pred_check_branch
      %18 = sbr.rel (0) target = $region9
    $region8: #{tpu_custom_call.1} parent=1 // pred_region
      _
    $region9: #{tpu_custom_call.1} parent=1 // pred_fallthru
      _
    // Predicated region
    $region10: #{tpu_custom_call.1} parent=1 // pred_check
      _
    $region11: #{tpu_custom_call.1} parent=1 // pred_check_branch
      %20 = sbr.rel (0) target = $region13
    $region12: #{tpu_custom_call.1} parent=1 // pred_region
      _
    $region13: #{tpu_custom_call.1} parent=1 // pred_fallthru
      _
    // Predicated region
    $region14: #{tpu_custom_call.1} parent=1 // pred_check
      _
    $region15: #{tpu_custom_call.1} parent=1 // pred_check_branch
      %22 = sbr.rel (0) target = $region17
    $region16: #{tpu_custom_call.1} parent=1 // pred_region
      _
    $region17: #{tpu_custom_call.1} parent=1 // pred_fallthru
      _
    // Predicated region
    $region18: #{tpu_custom_call.1} parent=1 // pred_check
      _
    $region19: #{tpu_custom_call.1} parent=1 // pred_check_branch
      %24 = sbr.rel (0) target = $region21
    $region20: #{tpu_custom_call.1} parent=1 // pred_region
      _
    $region21: #{tpu_custom_call.1} parent=1 // pred_fallthru
      _
    // Predicated region
    $region22: #{tpu_custom_call.1} parent=1 // pred_check
      _
    $region23: #{tpu_custom_call.1} parent=1 // pred_check_branch
      %26 = sbr.rel (0) target = $region25
    $region24: #{tpu_custom_call.1} parent=1 // pred_region
      _
    $region25: #{tpu_custom_call.1} parent=1 // pred_fallthru
      _
    // Predicated region
    $region26: #{tpu_custom_call.1} parent=1 // pred_check
      _
    $region27: #{tpu_custom_call.1} parent=1 // pred_check_branch
      %28 = sbr.rel (0) target = $region29
    $region28: #{tpu_custom_call.1} parent=1 // pred_region
      _
    $region29: #{tpu_custom_call.1} parent=1 // pred_fallthru
      _
    // Predicated region
    $region30: #{tpu_custom_call.1} parent=1 // pred_check
      _
    $region31: #{tpu_custom_call.1} parent=1 // pred_check_branch
      %30 = sbr.rel (0) target = $region33
    $region32: #{tpu_custom_call.1} parent=1 // pred_region
      _
    $region33: #{tpu_custom_call.1} parent=1 // pred_fallthru
      _
    // Predicated region
    $region34: #{tpu_custom_call.1} parent=1 // pred_check
      _
    $region35: #{tpu_custom_call.1} parent=1 // pred_check_branch
      %32 = sbr.rel (0) target = $region37
    $region36: #{tpu_custom_call.1} parent=1 // pred_region
      _
    $region37: #{tpu_custom_call.1} parent=1 // pred_fallthru
      _
    %v34 = vld [vmem:[%s0] sm:$0xff]
    %v35 = vpack.c.bf16 %v34, %v34
    %v36 = vld [vmem:[%s3] sm:$0xf]
    %v37 = vld [vmem:[%s3 + $0x4] sm:$0xf]
    %v38 = vld [vmem:[%s3 + $0x8] sm:$0xf]
    %v39 = vld [vmem:[%s3 + $0xc] sm:$0xf]
    %v40 = vld [vmem:[%s3 + $0x10] sm:$0xf]
    %v41 = vld [vmem:[%s3 + $0x14] sm:$0xf]
    %v42 = vld [vmem:[%s3 + $0x18] sm:$0xf]
    %v43 = vld [vmem:[%s3 + $0x1c] sm:$0xf]
    %v44 = vld [vmem:[%s4] sm:$0x1]
    %v46 = vlaneseq
    %v47 = vshrl.u32 %v46, 7
    %v48 = vsub.s32 0, %v47
    %v49 = vrot.slane %v44, %v48
    %v59 = vunpack.c.l.b16 %v36
    %v60 = vunpack.c.l.b16 %v37
    %v61 = vunpack.c.l.b16 %v38
    %v62 = vunpack.c.l.b16 %v39
    %v63 = vunpack.c.l.b16 %v40
    %v64 = vunpack.c.l.b16 %v41
    %v65 = vunpack.c.l.b16 %v42
    %v66 = vunpack.c.l.b16 %v43
    %v67 = vpack.c.b16 %v60, %v59
    %v68 = vpack.c.b16 %v62, %v61
    %v69 = vpack.c.b16 %v64, %v63
    %v70 = vpack.c.b16 %v66, %v65
    %vm75 = vcmask 523264
    %v77 = vsel %vm75, %v35, 0
    %79 = vmatprep.subr.bf16.mxu0 0
    %80 = vmatpush1.bf16.msra.mxu0 0
    %81 = vmatprep.subr.bf16.mxu0 0
    %82 = vmatpush1.bf16.msra.mxu0 0
    %83 = vmatprep.subr.bf16.mxu0 0
    %84 = vmatpush1.bf16.msra.mxu0 0
    %85 = vmatprep.subr.bf16.mxu0 0
    %86 = vmatpush1.bf16.msra.mxu0 0
    %87 = vmatprep.subr.bf16.mxu0 0
    %88 = vmatpush1.bf16.msra.mxu0 %v70
    %89 = vmatprep.subr.bf16.mxu0 0
    %90 = vmatpush1.bf16.msra.mxu0 %v69
    %91 = vmatprep.subr.bf16.mxu0 0
    %92 = vmatpush1.bf16.msra.mxu0 %v68
    %93 = vmatprep.subr.bf16.mxu0 0
    %94 = vmatpush1.bf16.msra.mxu0 %v67
    %95 = vmatprep.subr.bf16.mxu0 0
    %96 = vmatpush2.bf16.msra.mxu0 0
    %97 = vmatprep.subr.bf16.mxu0 0
    %98 = vmatpush2.bf16.msra.mxu0 0
    %99 = vmatprep.subr.bf16.mxu0 0
    %100 = vmatpush2.bf16.msra.mxu0 0
    %101 = vmatprep.subr.bf16.mxu0 0
    %102 = vmatpush2.bf16.msra.mxu0 0
    %103 = vmatprep.subr.bf16.mxu0 0
    %104 = vmatpush2.bf16.msra.mxu0 0
    %105 = vmatprep.subr.bf16.mxu0 0
    %106 = vmatpush2.bf16.msra.mxu0 0
    %107 = vmatprep.subr.bf16.mxu0 0
    %108 = vmatpush2.bf16.msra.mxu0 0
    %109 = vmatprep.subr.bf16.mxu0 0
    %110 = vmatpush2.bf16.msra.mxu0 0
    %111 = vmatprep.mubr.bf16.mxu0 0
    %112 = vmatmul.mubr.bf16.gmra.mxu0 %v77
    %v113 = vpop.f32.mrf.mxu0
    %v114 = vadd.f32 %v49, %v113
    %v115 = vpop.f32.mrf.mxu0
    %v116 = vpop.f32.mrf.mxu0
    %v117 = vpop.f32.mrf.mxu0
    %118 = vdwg.mxu0
    %v119 = vmax.f32 %v114, 0.0
    %v120 = vld [vmem:[%s1] sm:$0xff]
    %vm121 = vcmp.gt.f32.partialorder %v120, 0.2
    %v122 = vmul.f32 %v119, 1.25
    %v123 = vsel %vm121, %v122, 0.0
    %v124 = vpack.c.bf16 %v123, %v123
    %v125 = vld [vmem:[%s5] sm:$0xf]
    %v126 = vld [vmem:[%s5 + $0x4] sm:$0xf]
    %v127 = vld [vmem:[%s5 + $0x8] sm:$0xf]
    %v128 = vld [vmem:[%s5 + $0xc] sm:$0xf]
    %v129 = vld [vmem:[%s5 + $0x10] sm:$0xf]
    %v130 = vld [vmem:[%s5 + $0x14] sm:$0xf]
    %v131 = vld [vmem:[%s5 + $0x18] sm:$0xf]
    %v132 = vld [vmem:[%s5 + $0x1c] sm:$0xf]
    %v133 = vld [vmem:[%s5 + $0x20] sm:$0xf]
    %v134 = vld [vmem:[%s5 + $0x24] sm:$0xf]
    %v135 = vld [vmem:[%s5 + $0x28] sm:$0xf]
    %v136 = vld [vmem:[%s5 + $0x2c] sm:$0xf]
    %v137 = vld [vmem:[%s5 + $0x30] sm:$0xf]
    %v138 = vld [vmem:[%s5 + $0x34] sm:$0xf]
    %v139 = vld [vmem:[%s5 + $0x38] sm:$0xf]
    %v140 = vld [vmem:[%s5 + $0x3c] sm:$0xf]
    %v141 = vld [vmem:[%s6] sm:$0x1]
    %v143 = vlaneseq
    %v144 = vshrl.u32 %v143, 7
    %v145 = vsub.s32 0, %v144
    %v146 = vrot.slane %v141, %v145
    %v164 = vunpack.c.l.b16 %v125
    %v165 = vunpack.c.l.b16 %v126
    %v166 = vunpack.c.l.b16 %v127
    %v167 = vunpack.c.l.b16 %v128
    %v168 = vunpack.c.l.b16 %v129
    %v169 = vunpack.c.l.b16 %v130
    %v170 = vunpack.c.l.b16 %v131
    %v171 = vunpack.c.l.b16 %v132
    %v172 = vunpack.c.l.b16 %v133
    %v173 = vunpack.c.l.b16 %v134
    %v174 = vunpack.c.l.b16 %v135
    %v175 = vunpack.c.l.b16 %v136
    %v176 = vunpack.c.l.b16 %v137
    %v177 = vunpack.c.l.b16 %v138
    %v178 = vunpack.c.l.b16 %v139
    %v179 = vunpack.c.l.b16 %v140
    %v180 = vpack.c.b16 %v165, %v164
    %v181 = vpack.c.b16 %v167, %v166
    %v182 = vpack.c.b16 %v169, %v168
    %v183 = vpack.c.b16 %v171, %v170
    %v184 = vpack.c.b16 %v173, %v172
    %v185 = vpack.c.b16 %v175, %v174
    %v186 = vpack.c.b16 %v177, %v176
    %v187 = vpack.c.b16 %v179, %v178
    %196 = vmatprep.subr.bf16.mxu0 0
    %197 = vmatpush1.bf16.msra.mxu0 %v187
    %198 = vmatprep.subr.bf16.mxu0 0
    %199 = vmatpush1.bf16.msra.mxu0 %v186
    %200 = vmatprep.subr.bf16.mxu0 0
    %201 = vmatpush1.bf16.msra.mxu0 %v185
    %202 = vmatprep.subr.bf16.mxu0 0
    %203 = vmatpush1.bf16.msra.mxu0 %v184
    %204 = vmatprep.subr.bf16.mxu0 0
    %205 = vmatpush1.bf16.msra.mxu0 %v183
    %206 = vmatprep.subr.bf16.mxu0 0
    %207 = vmatpush1.bf16.msra.mxu0 %v182
    %208 = vmatprep.subr.bf16.mxu0 0
    %209 = vmatpush1.bf16.msra.mxu0 %v181
    %210 = vmatprep.subr.bf16.mxu0 0
    %211 = vmatpush1.bf16.msra.mxu0 %v180
    %212 = vmatprep.subr.bf16.mxu0 0
    %213 = vmatpush2.bf16.msra.mxu0 0
    %214 = vmatprep.subr.bf16.mxu0 0
    %215 = vmatpush2.bf16.msra.mxu0 0
    %216 = vmatprep.subr.bf16.mxu0 0
    %217 = vmatpush2.bf16.msra.mxu0 0
    %218 = vmatprep.subr.bf16.mxu0 0
    %219 = vmatpush2.bf16.msra.mxu0 0
    %220 = vmatprep.subr.bf16.mxu0 0
    %221 = vmatpush2.bf16.msra.mxu0 0
    %222 = vmatprep.subr.bf16.mxu0 0
    %223 = vmatpush2.bf16.msra.mxu0 0
    %224 = vmatprep.subr.bf16.mxu0 0
    %225 = vmatpush2.bf16.msra.mxu0 0
    %226 = vmatprep.subr.bf16.mxu0 0
    %227 = vmatpush2.bf16.msra.mxu0 0
    %228 = vmatprep.mubr.bf16.mxu0 0
    %229 = vmatmul.mubr.bf16.gmra.mxu0 %v124
    %v230 = vpop.f32.mrf.mxu0
    %v231 = vadd.f32 %v146, %v230
    %v232 = vpop.f32.mrf.mxu0
    %v233 = vpop.f32.mrf.mxu0
    %v234 = vpop.f32.mrf.mxu0
    %235 = vdwg.mxu0
    %v236 = vmax.f32 %v231, 0.0
    %v237 = vld [vmem:[%s2] sm:$0xff]
    %vm238 = vcmp.gt.f32.partialorder %v237, 0.5
    %v239 = vmul.f32 %v236, 2.0
    %v240 = vsel %vm238, %v239, 0.0
    %v241 = vpack.c.bf16 %v240, %v240
    %v242 = vld [vmem:[%s7] sm:$0xf]
    %v243 = vld [vmem:[%s7 + $0x4] sm:$0xf]
    %v244 = vld [vmem:[%s7 + $0x8] sm:$0xf]
    %v245 = vld [vmem:[%s7 + $0xc] sm:$0xf]
    %v246 = vld [vmem:[%s7 + $0x10] sm:$0xf]
    %v247 = vld [vmem:[%s7 + $0x14] sm:$0xf]
    %v248 = vld [vmem:[%s7 + $0x18] sm:$0xf]
    %v249 = vld [vmem:[%s7 + $0x1c] sm:$0xf]
    %v250 = vld [vmem:[%s8] sm:$0x1]
    %v252 = vlaneseq
    %v253 = vshrl.u32 %v252, 7
    %v254 = vsub.s32 0, %v253
    %v255 = vrot.slane %v250, %v254
    %v265 = vunpack.c.l.b16 %v242
    %v266 = vunpack.c.l.b16 %v243
    %v267 = vunpack.c.l.b16 %v244
    %v268 = vunpack.c.l.b16 %v245
    %v269 = vunpack.c.l.b16 %v246
    %v270 = vunpack.c.l.b16 %v247
    %v271 = vunpack.c.l.b16 %v248
    %v272 = vunpack.c.l.b16 %v249
    %v273 = vpack.c.b16 %v266, %v265
    %v274 = vpack.c.b16 %v268, %v267
    %v275 = vpack.c.b16 %v270, %v269
    %v276 = vpack.c.b16 %v272, %v271
    %v282 = vsel %vm75, %v241, 0
    %284 = vmatprep.subr.bf16.mxu0 0
    %285 = vmatpush1.bf16.msra.mxu0 0
    %286 = vmatprep.subr.bf16.mxu0 0
    %287 = vmatpush1.bf16.msra.mxu0 0
    %288 = vmatprep.subr.bf16.mxu0 0
    %289 = vmatpush1.bf16.msra.mxu0 0
    %290 = vmatprep.subr.bf16.mxu0 0
    %291 = vmatpush1.bf16.msra.mxu0 0
    %292 = vmatprep.subr.bf16.mxu0 0
    %293 = vmatpush1.bf16.msra.mxu0 %v276
    %294 = vmatprep.subr.bf16.mxu0 0
    %295 = vmatpush1.bf16.msra.mxu0 %v275
    %296 = vmatprep.subr.bf16.mxu0 0
    %297 = vmatpush1.bf16.msra.mxu0 %v274
    %298 = vmatprep.subr.bf16.mxu0 0
    %299 = vmatpush1.bf16.msra.mxu0 %v273
    %300 = vmatprep.subr.bf16.mxu0 0
    %301 = vmatpush2.bf16.msra.mxu0 0
    %302 = vmatprep.subr.bf16.mxu0 0
    %303 = vmatpush2.bf16.msra.mxu0 0
    %304 = vmatprep.subr.bf16.mxu0 0
    %305 = vmatpush2.bf16.msra.mxu0 0
    %306 = vmatprep.subr.bf16.mxu0 0
    %307 = vmatpush2.bf16.msra.mxu0 0
    %308 = vmatprep.subr.bf16.mxu0 0
    %309 = vmatpush2.bf16.msra.mxu0 0
    %310 = vmatprep.subr.bf16.mxu0 0
    %311 = vmatpush2.bf16.msra.mxu0 0
    %312 = vmatprep.subr.bf16.mxu0 0
    %313 = vmatpush2.bf16.msra.mxu0 0
    %314 = vmatprep.subr.bf16.mxu0 0
    %315 = vmatpush2.bf16.msra.mxu0 0
    %316 = vmatprep.mubr.bf16.mxu0 0
    %317 = vmatmul.mubr.bf16.gmra.mxu0 %v282
    %v318 = vpop.f32.mrf.mxu0
    %v319 = vadd.f32 %v255, %v318
    %v320 = vpop.f32.mrf.mxu0
    %v321 = vpop.f32.mrf.mxu0
    %v322 = vpop.f32.mrf.mxu0
    %323 = vdwg.mxu0
    %324 = vst [vmem:[#allocation2] sm:$0xff] %v319
    // Predicated region
    $region38: #{tpu_custom_call.1} parent=1 // pred_check
      _
    $region39: #{tpu_custom_call.1} parent=1 // pred_check_branch
      %326 = sbr.rel (0) target = $region41
    $region40: #{tpu_custom_call.1} parent=1 // pred_region
      %s328 = ssub.s32 128, 128
      %329 = vsyncadd [#allocation3], %s328
      %s331 = sshll.u32 [#allocation2], 4
      %s332 = int_to_ptr.vmem [resolvable:$true] %s331
      %334 = dma.vmem_to_hbm [thread:$0]  %s332, 128, %s9, [#allocation3]
    $region41: #{tpu_custom_call.1} parent=1 // pred_fallthru
      _
    // Predicated region
    $region42: #{tpu_custom_call.1} parent=1 // pred_check
      _
    $region43: #{tpu_custom_call.1} parent=1 // pred_check_branch
      %336 = sbr.rel (0) target = $region45
    $region44: #{tpu_custom_call.1} parent=1 // pred_region
      %337 = dma.done [#allocation3], 128
    $region45: #{tpu_custom_call.1} parent=1 // pred_fallthru
      _
    %338 = vsyncpa [#allocation3], 1

</llo_original>
